<compile_context>
chip_gen: v6e
topology: v6e:2x2x1
jax: 0.10.0
libtpu: 0.0.40
codegen_flags: <defaults>
</compile_context>

<pallas_src>
import functools

import jax
import jax.numpy as jnp
from jax import lax
from jax.experimental import pallas as pl
from jax.experimental.pallas import tpu as pltpu


def _round_up(x, m):
    return (x + m - 1) // m * m


def vnet_kernel(x_ref, w1_ref, b1_ref, w2_ref, b2_ref, w3t_ref, b3_ref, o_ref):
    """Fused 3-layer MLP on one batch tile.

    x_ref   : (TB, F)      compute dtype (f32 or bf16)
    w1_ref  : (F, H)       compute dtype      (stored [in, out] -> x @ W)
    b1_ref  : (1, H)       f32
    w2_ref  : (H, H)       compute dtype
    b2_ref  : (1, H)       f32
    w3t_ref : (n_out, H)   compute dtype      (PyTorch `predict.weight` layout)
    b3_ref  : (n_out, 1)   f32
    o_ref   : (n_out, TB)  f32  -- batch tile on the lane axis => lane-dense stores
    """
    cdt = w1_ref.dtype

    # Layer 1: Linear + ReLU. MXU matmul with f32 accumulation; bias/ReLU in f32.
    h = jnp.dot(x_ref[...], w1_ref[...], preferred_element_type=jnp.float32)
    h = jnp.maximum(h + b1_ref[...], 0.0)

    # Layer 2: Linear + ReLU.
    h = jnp.dot(h.astype(cdt), w2_ref[...], preferred_element_type=jnp.float32)
    h = jnp.maximum(h + b2_ref[...], 0.0)

    # Layer 3 computed transposed: (n_out, H) contracted with (TB, H) over H
    # gives (n_out, TB), so the output's minor dim is the batch tile (lane-dense).
    out_t = lax.dot_general(
        w3t_ref[...], h.astype(cdt),
        dimension_numbers=(((1,), (1,)), ((), ())),
        preferred_element_type=jnp.float32)
    o_ref[...] = (out_t + b3_ref[...]).astype(o_ref.dtype)


@functools.partial(jax.jit, static_argnames=("block_b", "compute_dtype"))
def vnet_forward(x, w1, b1, w2, b2, w3t, b3, *, block_b=512,
                 compute_dtype=jnp.float32):
    """x: (B, F); w1: (F, H); w2: (H, H); w3t: (n_out, H); b1/b2: (1, H); b3: (n_out, 1)."""
    B, F = x.shape
    H = w1.shape[1]
    n_out = w3t.shape[0]

    # Pad the batch so the output lane tile is a multiple of 128 and the grid is exact.
    B_pad = _round_up(B, 128)
    TB = min(block_b, B_pad)          # block_b and B_pad are multiples of 128
    B_pad = _round_up(B_pad, TB)
    if B_pad != B:
        x = jnp.pad(x, ((0, B_pad - B), (0, 0)))

    cdt = jnp.dtype(compute_dtype)
    itemsize = cdt.itemsize
    # Matmul operands in the compute dtype (bf16 halves x's HBM traffic on v6e/v7x);
    # biases stay f32 so the bias-add / ReLU run as f32 VPU ops everywhere (incl. v5e).
    x = x.astype(cdt)
    w1 = w1.astype(cdt)
    w2 = w2.astype(cdt)
    w3t = w3t.astype(cdt)
    b1 = b1.astype(jnp.float32)
    b2 = b2.astype(jnp.float32)
    b3 = b3.astype(jnp.float32)

    grid = (pl.cdiv(B_pad, TB),)
    resident = lambda shape: pl.BlockSpec(shape, lambda i: (0, 0))  # stays in VMEM

    flops = 2 * B_pad * (F * H + H * H + H * n_out)
    bytes_accessed = (B_pad * F * itemsize
                      + (F * H + H * H + n_out * H) * itemsize
                      + (2 * H + n_out) * 4
                      + n_out * B_pad * 4)

    out_t = pl.pallas_call(
        vnet_kernel,
        out_shape=jax.ShapeDtypeStruct((n_out, B_pad), jnp.float32),
        grid=grid,
        in_specs=[
            pl.BlockSpec((TB, F), lambda i: (i, 0)),   # streamed per batch tile
            resident((F, H)),
            resident((1, H)),
            resident((H, H)),
            resident((1, H)),
            resident((n_out, H)),
            resident((n_out, 1)),
        ],
        out_specs=pl.BlockSpec((n_out, TB), lambda i: (0, i)),  # lane-dense writes
        compiler_params=pltpu.CompilerParams(
            dimension_semantics=("parallel",),
            # Explicit scoped-VMEM budget: far above what TB<=512 needs, and well
            # inside v7x's 64 MiB physical VMEM (also fine on v5e/v6e 128 MiB).
            vmem_limit_bytes=32 * 1024 * 1024,
        ),
        cost_estimate=pl.CostEstimate(
            flops=flops, transcendentals=0, bytes_accessed=bytes_accessed),
    )(x, w1, b1, w2, b2, w3t, b3)

    return out_t[:, :B].T  # (B, n_out)


def init_linear(key, fan_in, fan_out):
    # Mimic torch.nn.Linear default init: U(-1/sqrt(fan_in), 1/sqrt(fan_in)).
    kw, kb = jax.random.split(key)
    bound = 1.0 / jnp.sqrt(jnp.float32(fan_in))
    # stored as [in, out] so the kernel computes x @ W (== x @ torch_W.T)
    w = jax.random.uniform(kw, (fan_in, fan_out), jnp.float32, -bound, bound)
    b = jax.random.uniform(kb, (1, fan_out), jnp.float32, -bound, bound)
    return w, b


if __name__ == "__main__":
    # Small shapes consistent with VNet(n_feature, n_hidden, n_output)
    batch, n_feature, n_hidden, n_output = 8, 4, 32, 1

    key = jax.random.PRNGKey(0)
    kx, k1, k2, k3 = jax.random.split(key, 4)

    x = jax.random.normal(kx, (batch, n_feature), jnp.float32)
    w1, b1 = init_linear(k1, n_feature, n_hidden)
    w2, b2 = init_linear(k2, n_hidden, n_hidden)
    w3, b3_row = init_linear(k3, n_hidden, n_output)

    w3t = w3.T                          # (n_out, H): PyTorch `predict.weight` layout
    b3 = b3_row.reshape(n_output, 1)    # (n_out, 1): broadcasts over the lane axis

    # f32 path (strict check).
    out = vnet_forward(x, w1, b1, w2, b2, w3t, b3)
    jax.block_until_ready(out)

    ref = jnp.maximum(x @ w1 + b1, 0.0)
    ref = jnp.maximum(ref @ w2 + b2, 0.0)
    ref = ref @ w3 + b3_row
    assert out.shape == (batch, n_output)
    assert jnp.allclose(out, ref, atol=1e-5, rtol=1e-5)

    # bf16 matmul path (MXU fast path on v6e/v7x; f32 accumulation + f32 bias/ReLU).
    out_bf16 = vnet_forward(x, w1, b1, w2, b2, w3t, b3,
                            compute_dtype=jnp.bfloat16)
    jax.block_until_ready(out_bf16)
    assert jnp.allclose(out_bf16, ref, atol=1e-1, rtol=1e-1)

    print("KERNEL_OK")
</pallas_src>

<mosaic_0001>
module attributes {stable_mosaic.version = 11 : i64} {
  func.func @vnet_kernel(%arg0: i32, %arg1: memref<128x4xf32, #tpu.memory_space<vmem>>, %arg2: memref<4x32xf32, #tpu.memory_space<vmem>>, %arg3: memref<1x32xf32, #tpu.memory_space<vmem>>, %arg4: memref<32x32xf32, #tpu.memory_space<vmem>>, %arg5: memref<1x32xf32, #tpu.memory_space<vmem>>, %arg6: memref<1x32xf32, #tpu.memory_space<vmem>>, %arg7: memref<1x1xf32, #tpu.memory_space<vmem>>, %arg8: memref<1x128xf32, #tpu.memory_space<vmem>>) attributes {dimension_semantics = [#tpu.dimension_semantics<parallel>], iteration_bounds = array<i64: 1>, scalar_prefetch = 0 : i64, scratch_operands = 0 : i64, tpu.core_type = #tpu.core_type<tc>, window_params = [{transform_indices = @transform_0, window_bounds = array<i64: 128, 4>}, {pipeline_mode = #tpu.pipeline_mode<synchronous>, transform_indices = @transform_1, window_bounds = array<i64: 4, 32>}, {pipeline_mode = #tpu.pipeline_mode<synchronous>, transform_indices = @transform_2, window_bounds = array<i64: 1, 32>}, {pipeline_mode = #tpu.pipeline_mode<synchronous>, transform_indices = @transform_3, window_bounds = array<i64: 32, 32>}, {pipeline_mode = #tpu.pipeline_mode<synchronous>, transform_indices = @transform_4, window_bounds = array<i64: 1, 32>}, {pipeline_mode = #tpu.pipeline_mode<synchronous>, transform_indices = @transform_5, window_bounds = array<i64: 1, 32>}, {pipeline_mode = #tpu.pipeline_mode<synchronous>, transform_indices = @transform_6, window_bounds = array<i64: 1, 1>}, {transform_indices = @transform_7, window_bounds = array<i64: 1, 128>}]} {
    %c0 = arith.constant 0 : index
    %c0_0 = arith.constant 0 : index
    %0 = vector.load %arg1[%c0, %c0_0] : memref<128x4xf32, #tpu.memory_space<vmem>>, vector<128x4xf32>
    %c0_1 = arith.constant 0 : index
    %c0_2 = arith.constant 0 : index
    %1 = vector.load %arg2[%c0_1, %c0_2] : memref<4x32xf32, #tpu.memory_space<vmem>>, vector<4x32xf32>
    %cst = arith.constant dense<0.000000e+00> : vector<128x32xf32>
    %2 = tpu.matmul %0, %1, %cst {dimension_numbers = #tpu.dot_dimension_numbers<[1], [0], [0], [1], [0, 0, 1, 1], [], []>} : vector<128x4xf32>, vector<4x32xf32>, vector<128x32xf32> -> vector<128x32xf32>
    %c0_3 = arith.constant 0 : index
    %c0_4 = arith.constant 0 : index
    %3 = vector.load %arg3[%c0_3, %c0_4] : memref<1x32xf32, #tpu.memory_space<vmem>>, vector<1x32xf32>
    %4 = vector.broadcast %3 : vector<1x32xf32> to vector<128x32xf32>
    %5 = arith.addf %2, %4 : vector<128x32xf32>
    %cst_5 = arith.constant 0.000000e+00 : f32
    %6 = vector.broadcast %cst_5 : f32 to vector<128x32xf32>
    %7 = arith.maximumf %5, %6 : vector<128x32xf32>
    %c0_6 = arith.constant 0 : index
    %c0_7 = arith.constant 0 : index
    %8 = vector.load %arg4[%c0_6, %c0_7] : memref<32x32xf32, #tpu.memory_space<vmem>>, vector<32x32xf32>
    %cst_8 = arith.constant dense<0.000000e+00> : vector<128x32xf32>
    %9 = tpu.matmul %7, %8, %cst_8 {dimension_numbers = #tpu.dot_dimension_numbers<[1], [0], [0], [1], [0, 0, 1, 1], [], []>} : vector<128x32xf32>, vector<32x32xf32>, vector<128x32xf32> -> vector<128x32xf32>
    %c0_9 = arith.constant 0 : index
    %c0_10 = arith.constant 0 : index
    %10 = vector.load %arg5[%c0_9, %c0_10] : memref<1x32xf32, #tpu.memory_space<vmem>>, vector<1x32xf32>
    %11 = vector.broadcast %10 : vector<1x32xf32> to vector<128x32xf32>
    %12 = arith.addf %9, %11 : vector<128x32xf32>
    %cst_11 = arith.constant 0.000000e+00 : f32
    %13 = vector.broadcast %cst_11 : f32 to vector<128x32xf32>
    %14 = arith.maximumf %12, %13 : vector<128x32xf32>
    %c0_12 = arith.constant 0 : index
    %c0_13 = arith.constant 0 : index
    %15 = vector.load %arg6[%c0_12, %c0_13] : memref<1x32xf32, #tpu.memory_space<vmem>>, vector<1x32xf32>
    %cst_14 = arith.constant dense<0.000000e+00> : vector<1x128xf32>
    %16 = tpu.matmul %15, %14, %cst_14 {dimension_numbers = #tpu.dot_dimension_numbers<[1], [1], [0], [0], [0, 0, 1, 0], [], []>} : vector<1x32xf32>, vector<128x32xf32>, vector<1x128xf32> -> vector<1x128xf32>
    %c0_15 = arith.constant 0 : index
    %c0_16 = arith.constant 0 : index
    %17 = vector.load %arg7[%c0_15, %c0_16] : memref<1x1xf32, #tpu.memory_space<vmem>>, vector<1x1xf32>
    %18 = vector.broadcast %17 : vector<1x1xf32> to vector<1x128xf32>
    %19 = arith.addf %16, %18 : vector<1x128xf32>
    %c0_17 = arith.constant 0 : index
    %c0_18 = arith.constant 0 : index
    %20 = vector.load %arg8[%c0_17, %c0_18] : memref<1x128xf32, #tpu.memory_space<vmem>>, vector<1x128xf32>
    tpu.vector_store %arg8[%c0_17, %c0_18], %19 {strides = array<i32>} : memref<1x128xf32, #tpu.memory_space<vmem>>, vector<1x128xf32>,
    return
  }
  func.func @transform_0(%arg0: i32) -> (i32, i32) {
    %c0_i32 = arith.constant 0 : i32
    %c0_i32_0 = arith.constant 0 : i32
    return %arg0, %c0_i32 : i32, i32
  }
  func.func @transform_1(%arg0: i32) -> (i32, i32) {
    %c0_i32 = arith.constant 0 : i32
    %c0_i32_0 = arith.constant 0 : i32
    %c0_i32_1 = arith.constant 0 : i32
    return %c0_i32, %c0_i32_0 : i32, i32
  }
  func.func @transform_2(%arg0: i32) -> (i32, i32) {
    %c0_i32 = arith.constant 0 : i32
    %c0_i32_0 = arith.constant 0 : i32
    %c0_i32_1 = arith.constant 0 : i32
    return %c0_i32, %c0_i32_0 : i32, i32
  }
  func.func @transform_3(%arg0: i32) -> (i32, i32) {
    %c0_i32 = arith.constant 0 : i32
    %c0_i32_0 = arith.constant 0 : i32
    %c0_i32_1 = arith.constant 0 : i32
    return %c0_i32, %c0_i32_0 : i32, i32
  }
  func.func @transform_4(%arg0: i32) -> (i32, i32) {
    %c0_i32 = arith.constant 0 : i32
    %c0_i32_0 = arith.constant 0 : i32
    %c0_i32_1 = arith.constant 0 : i32
    return %c0_i32, %c0_i32_0 : i32, i32
  }
  func.func @transform_5(%arg0: i32) -> (i32, i32) {
    %c0_i32 = arith.constant 0 : i32
    %c0_i32_0 = arith.constant 0 : i32
    %c0_i32_1 = arith.constant 0 : i32
    return %c0_i32, %c0_i32_0 : i32, i32
  }
  func.func @transform_6(%arg0: i32) -> (i32, i32) {
    %c0_i32 = arith.constant 0 : i32
    %c0_i32_0 = arith.constant 0 : i32
    %c0_i32_1 = arith.constant 0 : i32
    return %c0_i32, %c0_i32_0 : i32, i32
  }
  func.func @transform_7(%arg0: i32) -> (i32, i32) {
    %c0_i32 = arith.constant 0 : i32
    %c0_i32_0 = arith.constant 0 : i32
    return %c0_i32, %arg0 : i32, i32
  }
}

</mosaic_0001>

<llo_original>
// kernel: vnet_forward.1
$region0: #{vnet_forward.1}
  #allocation0 [shape = 'u32[]', space=smem, size = 0x4, offset = 0x4, fixed_abs, tag = 'smem constant byte address 0x4 - core index']
  #allocation1 [shape = 'u32[144,128]{1,0:T(1,128)}', space=vmem, size = 0x12000, scoped, tag = 'internal scratch']
  #allocation2 [shape = 'f32[1,1]{1,0:T(1,128)S(1)}', space=vmem, size = 0x200, scoped, tag = 'scoped memory for vnet_forward.1']
  %s0 = inlined_call_operand.vmem [shape: f32[128,4], index: 0, kind: input, shape index: {}]
  %s1 = inlined_call_operand.vmem [shape: f32[4,32], index: 1, kind: input, shape index: {}]
  %s2 = inlined_call_operand.vmem [shape: f32[1,32], index: 2, kind: input, shape index: {}]
  %s3 = inlined_call_operand.vmem [shape: f32[32,32], index: 3, kind: input, shape index: {}]
  %s4 = inlined_call_operand.vmem [shape: f32[1,32], index: 4, kind: input, shape index: {}]
  %s5 = inlined_call_operand.vmem [shape: f32[1,32], index: 5, kind: input, shape index: {}]
  %s6 = inlined_call_operand.<no memory space> [shape: f32[1,1], index: 6, kind: input, shape index: {}]
  %s7 = inlined_call_operand.vmem [shape: f32[1,128], index: 7, kind: output, shape index: {}]
  %s8 = sld [smem:[#allocation0]]
  $region38: #{vnet_forward.1} parent=0
    _
  %s10 = ssub.s32 1, %s8
  %s11 = scalar_select 0, %s10, %s8
  %v12 = vstv %s6
  %13 = vst [vmem:[#allocation2] sm:$0x1] %v12
  // Predicated region
  $region2: #{vnet_forward.1} parent=0 // pred_check
    _
  $region3: #{vnet_forward.1} parent=0 // pred_check_branch
    %15 = sbr.rel (0) target = $region5
  $region4: #{vnet_forward.1} parent=0 // pred_region
    _
  $region5: #{vnet_forward.1} parent=0 // pred_fallthru
    _
  // Predicated region
  $region6: #{vnet_forward.1} parent=0 // pred_check
    _
  $region7: #{vnet_forward.1} parent=0 // pred_check_branch
    %17 = sbr.rel (0) target = $region9
  $region8: #{vnet_forward.1} parent=0 // pred_region
    _
  $region9: #{vnet_forward.1} parent=0 // pred_fallthru
    _
  // Predicated region
  $region10: #{vnet_forward.1} parent=0 // pred_check
    _
  $region11: #{vnet_forward.1} parent=0 // pred_check_branch
    %19 = sbr.rel (0) target = $region13
  $region12: #{vnet_forward.1} parent=0 // pred_region
    _
  $region13: #{vnet_forward.1} parent=0 // pred_fallthru
    _
  // Predicated region
  $region14: #{vnet_forward.1} parent=0 // pred_check
    _
  $region15: #{vnet_forward.1} parent=0 // pred_check_branch
    %21 = sbr.rel (0) target = $region17
  $region16: #{vnet_forward.1} parent=0 // pred_region
    _
  $region17: #{vnet_forward.1} parent=0 // pred_fallthru
    _
  // Predicated region
  $region18: #{vnet_forward.1} parent=0 // pred_check
    _
  $region19: #{vnet_forward.1} parent=0 // pred_check_branch
    %23 = sbr.rel (0) target = $region21
  $region20: #{vnet_forward.1} parent=0 // pred_region
    _
  $region21: #{vnet_forward.1} parent=0 // pred_fallthru
    _
  // Predicated region
  $region22: #{vnet_forward.1} parent=0 // pred_check
    _
  $region23: #{vnet_forward.1} parent=0 // pred_check_branch
    %25 = sbr.rel (0) target = $region25
  $region24: #{vnet_forward.1} parent=0 // pred_region
    _
  $region25: #{vnet_forward.1} parent=0 // pred_fallthru
    _
  // Predicated region
  $region26: #{vnet_forward.1} parent=0 // pred_check
    _
  $region27: #{vnet_forward.1} parent=0 // pred_check_branch
    %27 = sbr.rel (0) target = $region29
  $region28: #{vnet_forward.1} parent=0 // pred_region
    _
  $region29: #{vnet_forward.1} parent=0 // pred_fallthru
    _
  %v28 = vld [vmem:[%s0] sm:$0xff]
  %v29 = vld [vmem:[%s0 + $0x8] sm:$0xff]
  %v30 = vld [vmem:[%s0 + $0x10] sm:$0xff]
  %v31 = vld [vmem:[%s0 + $0x18] sm:$0xff]
  %v32 = vld [vmem:[%s0 + $0x20] sm:$0xff]
  %v33 = vld [vmem:[%s0 + $0x28] sm:$0xff]
  %v34 = vld [vmem:[%s0 + $0x30] sm:$0xff]
  %v35 = vld [vmem:[%s0 + $0x38] sm:$0xff]
  %v36 = vld [vmem:[%s0 + $0x40] sm:$0xff]
  %v37 = vld [vmem:[%s0 + $0x48] sm:$0xff]
  %v38 = vld [vmem:[%s0 + $0x50] sm:$0xff]
  %v39 = vld [vmem:[%s0 + $0x58] sm:$0xff]
  %v40 = vld [vmem:[%s0 + $0x60] sm:$0xff]
  %v41 = vld [vmem:[%s0 + $0x68] sm:$0xff]
  %v42 = vld [vmem:[%s0 + $0x70] sm:$0xff]
  %v43 = vld [vmem:[%s0 + $0x78] sm:$0xff]
  %v44 = vld [vmem:[%s1] sm:$0xf]
  %v45 = vld [vmem:[%s2] sm:$0x1]
  %v47 = vlaneseq
  %v48 = vshrl.u32 %v47, 7
  %v49 = vsub.s32 0, %v48
  %v50 = vrot.slane %v45, %v49
  %vm52 = vcmask 31744
  %v54 = vsel %vm52, %v28, 0
  %v57 = vsel %vm52, %v29, 0
  %v60 = vsel %vm52, %v30, 0
  %v63 = vsel %vm52, %v31, 0
  %v66 = vsel %vm52, %v32, 0
  %v69 = vsel %vm52, %v33, 0
  %v72 = vsel %vm52, %v34, 0
  %v75 = vsel %vm52, %v35, 0
  %v78 = vsel %vm52, %v36, 0
  %v81 = vsel %vm52, %v37, 0
  %v84 = vsel %vm52, %v38, 0
  %v87 = vsel %vm52, %v39, 0
  %v90 = vsel %vm52, %v40, 0
  %v93 = vsel %vm52, %v41, 0
  %v96 = vsel %vm52, %v42, 0
  %v99 = vsel %vm52, %v43, 0
  %vm101 = vcmask 1043456
  %v103 = vsel %vm101, %v44, 0
  %105 = vmatprep.subr.mxu0 0.0
  %106 = vmatpush1.msra.mxu0 0.0
  %107 = vmatprep.subr.mxu0 0.0
  %108 = vmatpush1.msra.mxu0 0.0
  %109 = vmatprep.subr.mxu0 0.0
  %110 = vmatpush1.msra.mxu0 0.0
  %111 = vmatprep.subr.mxu0 0.0
  %112 = vmatpush1.msra.mxu0 0.0
  %113 = vmatprep.subr.mxu0 0.0
  %114 = vmatpush1.msra.mxu0 0.0
  %115 = vmatprep.subr.mxu0 0.0
  %116 = vmatpush1.msra.mxu0 0.0
  %117 = vmatprep.subr.mxu0 0.0
  %118 = vmatpush1.msra.mxu0 0.0
  %119 = vmatprep.subr.mxu0 0.0
  %120 = vmatpush1.msra.mxu0 0.0
  %121 = vmatprep.subr.mxu0 0.0
  %122 = vmatpush1.msra.mxu0 0.0
  %123 = vmatprep.subr.mxu0 0.0
  %124 = vmatpush1.msra.mxu0 0.0
  %125 = vmatprep.subr.mxu0 0.0
  %126 = vmatpush1.msra.mxu0 0.0
  %127 = vmatprep.subr.mxu0 0.0
  %128 = vmatpush1.msra.mxu0 0.0
  %129 = vmatprep.subr.mxu0 0.0
  %130 = vmatpush1.msra.mxu0 0.0
  %131 = vmatprep.subr.mxu0 0.0
  %132 = vmatpush1.msra.mxu0 0.0
  %133 = vmatprep.subr.mxu0 0.0
  %134 = vmatpush1.msra.mxu0 0.0
  %135 = vmatprep.subr.mxu0 0.0
  %136 = vmatpush1.msra.mxu0 %v103
  %137 = vmatprep.subr.mxu0 0.0
  %138 = vmatpush2.msra.mxu0 0.0
  %139 = vmatprep.subr.mxu0 0.0
  %140 = vmatpush2.msra.mxu0 0.0
  %141 = vmatprep.subr.mxu0 0.0
  %142 = vmatpush2.msra.mxu0 0.0
  %143 = vmatprep.subr.mxu0 0.0
  %144 = vmatpush2.msra.mxu0 0.0
  %145 = vmatprep.subr.mxu0 0.0
  %146 = vmatpush2.msra.mxu0 0.0
  %147 = vmatprep.subr.mxu0 0.0
  %148 = vmatpush2.msra.mxu0 0.0
  %149 = vmatprep.subr.mxu0 0.0
  %150 = vmatpush2.msra.mxu0 0.0
  %151 = vmatprep.subr.mxu0 0.0
  %152 = vmatpush2.msra.mxu0 0.0
  %153 = vmatprep.subr.mxu0 0.0
  %154 = vmatpush2.msra.mxu0 0.0
  %155 = vmatprep.subr.mxu0 0.0
  %156 = vmatpush2.msra.mxu0 0.0
  %157 = vmatprep.subr.mxu0 0.0
  %158 = vmatpush2.msra.mxu0 0.0
  %159 = vmatprep.subr.mxu0 0.0
  %160 = vmatpush2.msra.mxu0 0.0
  %161 = vmatprep.subr.mxu0 0.0
  %162 = vmatpush2.msra.mxu0 0.0
  %163 = vmatprep.subr.mxu0 0.0
  %164 = vmatpush2.msra.mxu0 0.0
  %165 = vmatprep.subr.mxu0 0.0
  %166 = vmatpush2.msra.mxu0 0.0
  %167 = vmatprep.subr.mxu0 0.0
  %168 = vmatpush2.msra.mxu0 0.0
  %169 = vmatprep.mubr.f32.mxu0 0.0
  %170 = vmatmul.mubr.f32.gmra.mxu0 %v54
  %v171 = vpop.f32.mrf.mxu0
  %v172 = vadd.f32 %v50, %v171
  %v173 = vpop.f32.mrf.mxu0
  %174 = vmatprep.mubr.f32.mxu0 0.0
  %175 = vmatmul.mubr.f32.gmra.mxu0 %v57
  %v176 = vpop.f32.mrf.mxu0
  %v177 = vadd.f32 %v50, %v176
  %v178 = vpop.f32.mrf.mxu0
  %179 = vmatprep.mubr.f32.mxu0 0.0
  %180 = vmatmul.mubr.f32.gmra.mxu0 %v60
  %v181 = vpop.f32.mrf.mxu0
  %v182 = vadd.f32 %v50, %v181
  %v183 = vpop.f32.mrf.mxu0
  %184 = vmatprep.mubr.f32.mxu0 0.0
  %185 = vmatmul.mubr.f32.gmra.mxu0 %v63
  %v186 = vpop.f32.mrf.mxu0
  %v187 = vadd.f32 %v50, %v186
  %v188 = vpop.f32.mrf.mxu0
  %189 = vmatprep.mubr.f32.mxu0 0.0
  %190 = vmatmul.mubr.f32.gmra.mxu0 %v66
  %v191 = vpop.f32.mrf.mxu0
  %v192 = vadd.f32 %v50, %v191
  %v193 = vpop.f32.mrf.mxu0
  %194 = vmatprep.mubr.f32.mxu0 0.0
  %195 = vmatmul.mubr.f32.gmra.mxu0 %v69
  %v196 = vpop.f32.mrf.mxu0
  %v197 = vadd.f32 %v50, %v196
  %v198 = vpop.f32.mrf.mxu0
  %199 = vmatprep.mubr.f32.mxu0 0.0
  %200 = vmatmul.mubr.f32.gmra.mxu0 %v72
  %v201 = vpop.f32.mrf.mxu0
  %v202 = vadd.f32 %v50, %v201
  %v203 = vpop.f32.mrf.mxu0
  %204 = vmatprep.mubr.f32.mxu0 0.0
  %205 = vmatmul.mubr.f32.gmra.mxu0 %v75
  %v206 = vpop.f32.mrf.mxu0
  %v207 = vadd.f32 %v50, %v206
  %v208 = vpop.f32.mrf.mxu0
  %209 = vmatprep.mubr.f32.mxu0 0.0
  %210 = vmatmul.mubr.f32.gmra.mxu0 %v78
  %v211 = vpop.f32.mrf.mxu0
  %v212 = vadd.f32 %v50, %v211
  %v213 = vpop.f32.mrf.mxu0
  %214 = vmatprep.mubr.f32.mxu0 0.0
  %215 = vmatmul.mubr.f32.gmra.mxu0 %v81
  %v216 = vpop.f32.mrf.mxu0
  %v217 = vadd.f32 %v50, %v216
  %v218 = vpop.f32.mrf.mxu0
  %219 = vmatprep.mubr.f32.mxu0 0.0
  %220 = vmatmul.mubr.f32.gmra.mxu0 %v84
  %v221 = vpop.f32.mrf.mxu0
  %v222 = vadd.f32 %v50, %v221
  %v223 = vpop.f32.mrf.mxu0
  %224 = vmatprep.mubr.f32.mxu0 0.0
  %225 = vmatmul.mubr.f32.gmra.mxu0 %v87
  %v226 = vpop.f32.mrf.mxu0
  %v227 = vadd.f32 %v50, %v226
  %v228 = vpop.f32.mrf.mxu0
  %229 = vmatprep.mubr.f32.mxu0 0.0
  %230 = vmatmul.mubr.f32.gmra.mxu0 %v90
  %v231 = vpop.f32.mrf.mxu0
  %v232 = vadd.f32 %v50, %v231
  %v233 = vpop.f32.mrf.mxu0
  %234 = vmatprep.mubr.f32.mxu0 0.0
  %235 = vmatmul.mubr.f32.gmra.mxu0 %v93
  %v236 = vpop.f32.mrf.mxu0
  %v237 = vadd.f32 %v50, %v236
  %v238 = vpop.f32.mrf.mxu0
  %239 = vmatprep.mubr.f32.mxu0 0.0
  %240 = vmatmul.mubr.f32.gmra.mxu0 %v96
  %v241 = vpop.f32.mrf.mxu0
  %v242 = vadd.f32 %v50, %v241
  %v243 = vpop.f32.mrf.mxu0
  %244 = vmatprep.mubr.f32.mxu0 0.0
  %245 = vmatmul.mubr.f32.gmra.mxu0 %v99
  %v246 = vpop.f32.mrf.mxu0
  %v247 = vadd.f32 %v50, %v246
  %v248 = vpop.f32.mrf.mxu0
  %249 = vdwg.mxu0
  %v250 = vmax.f32 %v172, 0.0
  %v251 = vmax.f32 %v177, 0.0
  %v252 = vmax.f32 %v182, 0.0
  %v253 = vmax.f32 %v187, 0.0
  %v254 = vmax.f32 %v192, 0.0
  %v255 = vmax.f32 %v197, 0.0
  %v256 = vmax.f32 %v202, 0.0
  %v257 = vmax.f32 %v207, 0.0
  %v258 = vmax.f32 %v212, 0.0
  %v259 = vmax.f32 %v217, 0.0
  %v260 = vmax.f32 %v222, 0.0
  %v261 = vmax.f32 %v227, 0.0
  %v262 = vmax.f32 %v232, 0.0
  %v263 = vmax.f32 %v237, 0.0
  %v264 = vmax.f32 %v242, 0.0
  %v265 = vmax.f32 %v247, 0.0
  %v266 = vld [vmem:[%s3] sm:$0xff]
  %v267 = vld [vmem:[%s3 + $0x8] sm:$0xff]
  %v268 = vld [vmem:[%s3 + $0x10] sm:$0xff]
  %v269 = vld [vmem:[%s3 + $0x18] sm:$0xff]
  %v270 = vld [vmem:[%s4] sm:$0x1]
  %v272 = vlaneseq
  %v273 = vshrl.u32 %v272, 7
  %v274 = vsub.s32 0, %v273
  %v275 = vrot.slane %v270, %v274
  %vm277 = vcmask 261120
  %v279 = vsel %vm277, %v250, 0
  %v282 = vsel %vm277, %v251, 0
  %v285 = vsel %vm277, %v252, 0
  %v288 = vsel %vm277, %v253, 0
  %v291 = vsel %vm277, %v254, 0
  %v294 = vsel %vm277, %v255, 0
  %v297 = vsel %vm277, %v256, 0
  %v300 = vsel %vm277, %v257, 0
  %v303 = vsel %vm277, %v258, 0
  %v306 = vsel %vm277, %v259, 0
  %v309 = vsel %vm277, %v260, 0
  %v312 = vsel %vm277, %v261, 0
  %v315 = vsel %vm277, %v262, 0
  %v318 = vsel %vm277, %v263, 0
  %v321 = vsel %vm277, %v264, 0
  %v324 = vsel %vm277, %v265, 0
  %326 = vmatprep.subr.mxu0 0.0
  %327 = vmatpush1.msra.mxu0 0.0
  %328 = vmatprep.subr.mxu0 0.0
  %329 = vmatpush1.msra.mxu0 0.0
  %330 = vmatprep.subr.mxu0 0.0
  %331 = vmatpush1.msra.mxu0 0.0
  %332 = vmatprep.subr.mxu0 0.0
  %333 = vmatpush1.msra.mxu0 0.0
  %334 = vmatprep.subr.mxu0 0.0
  %335 = vmatpush1.msra.mxu0 0.0
  %336 = vmatprep.subr.mxu0 0.0
  %337 = vmatpush1.msra.mxu0 0.0
  %338 = vmatprep.subr.mxu0 0.0
  %339 = vmatpush1.msra.mxu0 0.0
  %340 = vmatprep.subr.mxu0 0.0
  %341 = vmatpush1.msra.mxu0 0.0
  %342 = vmatprep.subr.mxu0 0.0
  %343 = vmatpush1.msra.mxu0 0.0
  %344 = vmatprep.subr.mxu0 0.0
  %345 = vmatpush1.msra.mxu0 0.0
  %346 = vmatprep.subr.mxu0 0.0
  %347 = vmatpush1.msra.mxu0 0.0
  %348 = vmatprep.subr.mxu0 0.0
  %349 = vmatpush1.msra.mxu0 0.0
  %350 = vmatprep.subr.mxu0 0.0
  %351 = vmatpush1.msra.mxu0 %v269
  %352 = vmatprep.subr.mxu0 0.0
  %353 = vmatpush1.msra.mxu0 %v268
  %354 = vmatprep.subr.mxu0 0.0
  %355 = vmatpush1.msra.mxu0 %v267
  %356 = vmatprep.subr.mxu0 0.0
  %357 = vmatpush1.msra.mxu0 %v266
  %358 = vmatprep.subr.mxu0 0.0
  %359 = vmatpush2.msra.mxu0 0.0
  %360 = vmatprep.subr.mxu0 0.0
  %361 = vmatpush2.msra.mxu0 0.0
  %362 = vmatprep.subr.mxu0 0.0
  %363 = vmatpush2.msra.mxu0 0.0
  %364 = vmatprep.subr.mxu0 0.0
  %365 = vmatpush2.msra.mxu0 0.0
  %366 = vmatprep.subr.mxu0 0.0
  %367 = vmatpush2.msra.mxu0 0.0
  %368 = vmatprep.subr.mxu0 0.0
  %369 = vmatpush2.msra.mxu0 0.0
  %370 = vmatprep.subr.mxu0 0.0
  %371 = vmatpush2.msra.mxu0 0.0
  %372 = vmatprep.subr.mxu0 0.0
  %373 = vmatpush2.msra.mxu0 0.0
  %374 = vmatprep.subr.mxu0 0.0
  %375 = vmatpush2.msra.mxu0 0.0
  %376 = vmatprep.subr.mxu0 0.0
  %377 = vmatpush2.msra.mxu0 0.0
  %378 = vmatprep.subr.mxu0 0.0
  %379 = vmatpush2.msra.mxu0 0.0
  %380 = vmatprep.subr.mxu0 0.0
  %381 = vmatpush2.msra.mxu0 0.0
  %382 = vmatprep.subr.mxu0 0.0
  %383 = vmatpush2.msra.mxu0 0.0
  %384 = vmatprep.subr.mxu0 0.0
  %385 = vmatpush2.msra.mxu0 0.0
  %386 = vmatprep.subr.mxu0 0.0
  %387 = vmatpush2.msra.mxu0 0.0
  %388 = vmatprep.subr.mxu0 0.0
  %389 = vmatpush2.msra.mxu0 0.0
  %390 = vmatprep.mubr.f32.mxu0 0.0
  %391 = vmatmul.mubr.f32.gmra.mxu0 %v279
  %v392 = vpop.f32.mrf.mxu0
  %v393 = vadd.f32 %v275, %v392
  %v394 = vpop.f32.mrf.mxu0
  %395 = vmatprep.mubr.f32.mxu0 0.0
  %396 = vmatmul.mubr.f32.gmra.mxu0 %v282
  %v397 = vpop.f32.mrf.mxu0
  %v398 = vadd.f32 %v275, %v397
  %v399 = vpop.f32.mrf.mxu0
  %400 = vmatprep.mubr.f32.mxu0 0.0
  %401 = vmatmul.mubr.f32.gmra.mxu0 %v285
  %v402 = vpop.f32.mrf.mxu0
  %v403 = vadd.f32 %v275, %v402
  %v404 = vpop.f32.mrf.mxu0
  %405 = vmatprep.mubr.f32.mxu0 0.0
  %406 = vmatmul.mubr.f32.gmra.mxu0 %v288
  %v407 = vpop.f32.mrf.mxu0
  %v408 = vadd.f32 %v275, %v407
  %v409 = vpop.f32.mrf.mxu0
  %410 = vmatprep.mubr.f32.mxu0 0.0
  %411 = vmatmul.mubr.f32.gmra.mxu0 %v291
  %v412 = vpop.f32.mrf.mxu0
  %v413 = vadd.f32 %v275, %v412
  %v414 = vpop.f32.mrf.mxu0
  %415 = vmatprep.mubr.f32.mxu0 0.0
  %416 = vmatmul.mubr.f32.gmra.mxu0 %v294
  %v417 = vpop.f32.mrf.mxu0
  %v418 = vadd.f32 %v275, %v417
  %v419 = vpop.f32.mrf.mxu0
  %420 = vmatprep.mubr.f32.mxu0 0.0
  %421 = vmatmul.mubr.f32.gmra.mxu0 %v297
  %v422 = vpop.f32.mrf.mxu0
  %v423 = vadd.f32 %v275, %v422
  %v424 = vpop.f32.mrf.mxu0
  %425 = vmatprep.mubr.f32.mxu0 0.0
  %426 = vmatmul.mubr.f32.gmra.mxu0 %v300
  %v427 = vpop.f32.mrf.mxu0
  %v428 = vadd.f32 %v275, %v427
  %v429 = vpop.f32.mrf.mxu0
  %430 = vmatprep.mubr.f32.mxu0 0.0
  %431 = vmatmul.mubr.f32.gmra.mxu0 %v303
  %v432 = vpop.f32.mrf.mxu0
  %v433 = vadd.f32 %v275, %v432
  %v434 = vpop.f32.mrf.mxu0
  %435 = vmatprep.mubr.f32.mxu0 0.0
  %436 = vmatmul.mubr.f32.gmra.mxu0 %v306
  %v437 = vpop.f32.mrf.mxu0
  %v438 = vadd.f32 %v275, %v437
  %v439 = vpop.f32.mrf.mxu0
  %440 = vmatprep.mubr.f32.mxu0 0.0
  %441 = vmatmul.mubr.f32.gmra.mxu0 %v309
  %v442 = vpop.f32.mrf.mxu0
  %v443 = vadd.f32 %v275, %v442
  %v444 = vpop.f32.mrf.mxu0
  %445 = vmatprep.mubr.f32.mxu0 0.0
  %446 = vmatmul.mubr.f32.gmra.mxu0 %v312
  %v447 = vpop.f32.mrf.mxu0
  %v448 = vadd.f32 %v275, %v447
  %v449 = vpop.f32.mrf.mxu0
  %450 = vmatprep.mubr.f32.mxu0 0.0
  %451 = vmatmul.mubr.f32.gmra.mxu0 %v315
  %v452 = vpop.f32.mrf.mxu0
  %v453 = vadd.f32 %v275, %v452
  %v454 = vpop.f32.mrf.mxu0
  %455 = vmatprep.mubr.f32.mxu0 0.0
  %456 = vmatmul.mubr.f32.gmra.mxu0 %v318
  %v457 = vpop.f32.mrf.mxu0
  %v458 = vadd.f32 %v275, %v457
  %v459 = vpop.f32.mrf.mxu0
  %460 = vmatprep.mubr.f32.mxu0 0.0
  %461 = vmatmul.mubr.f32.gmra.mxu0 %v321
  %v462 = vpop.f32.mrf.mxu0
  %v463 = vadd.f32 %v275, %v462
  %v464 = vpop.f32.mrf.mxu0
  %465 = vmatprep.mubr.f32.mxu0 0.0
  %466 = vmatmul.mubr.f32.gmra.mxu0 %v324
  %v467 = vpop.f32.mrf.mxu0
  %v468 = vadd.f32 %v275, %v467
  %v469 = vpop.f32.mrf.mxu0
  %470 = vdwg.mxu0
  %v471 = vmax.f32 %v393, 0.0
  %v472 = vmax.f32 %v398, 0.0
  %v473 = vmax.f32 %v403, 0.0
  %v474 = vmax.f32 %v408, 0.0
  %v475 = vmax.f32 %v413, 0.0
  %v476 = vmax.f32 %v418, 0.0
  %v477 = vmax.f32 %v423, 0.0
  %v478 = vmax.f32 %v428, 0.0
  %v479 = vmax.f32 %v433, 0.0
  %v480 = vmax.f32 %v438, 0.0
  %v481 = vmax.f32 %v443, 0.0
  %v482 = vmax.f32 %v448, 0.0
  %v483 = vmax.f32 %v453, 0.0
  %v484 = vmax.f32 %v458, 0.0
  %v485 = vmax.f32 %v463, 0.0
  %v486 = vmax.f32 %v468, 0.0
  %v487 = vld [vmem:[%s5] sm:$0x1]
  %v488 = vld [vmem:[#allocation2] sm:$0x1]
  %490 = vset.pattern.permute.xlu0 0
  %491 = vperm.xlu0 %490, %v488
  %v492 = vpop.permute.xlu0 %491
  %v494 = vlaneseq
  %v495 = vshrl.u32 %v494, 7
  %v496 = vsub.s32 0, %v495
  %v497 = vrot.slane %v492, %v496
  %v499 = vsel %vm277, %v487, 0
  %v502 = vsel %vm277, %v471, 0
  %v505 = vsel %vm277, %v472, 0
  %v508 = vsel %vm277, %v473, 0
  %v511 = vsel %vm277, %v474, 0
  %v514 = vsel %vm277, %v475, 0
  %v517 = vsel %vm277, %v476, 0
  %v520 = vsel %vm277, %v477, 0
  %v523 = vsel %vm277, %v478, 0
  %v526 = vsel %vm277, %v479, 0
  %v529 = vsel %vm277, %v480, 0
  %v532 = vsel %vm277, %v481, 0
  %v535 = vsel %vm277, %v482, 0
  %v538 = vsel %vm277, %v483, 0
  %v541 = vsel %vm277, %v484, 0
  %v544 = vsel %vm277, %v485, 0
  %v547 = vsel %vm277, %v486, 0
  %549 = vmatprep.subr.mxu0 0.0
  %550 = vmatpush1.xpose.msra.mxu0 %v547
  %551 = vmatprep.subr.mxu0 0.0
  %552 = vmatpush1.xpose.msra.mxu0 %v544
  %553 = vmatprep.subr.mxu0 0.0
  %554 = vmatpush1.xpose.msra.mxu0 %v541
  %555 = vmatprep.subr.mxu0 0.0
  %556 = vmatpush1.xpose.msra.mxu0 %v538
  %557 = vmatprep.subr.mxu0 0.0
  %558 = vmatpush1.xpose.msra.mxu0 %v535
  %559 = vmatprep.subr.mxu0 0.0
  %560 = vmatpush1.xpose.msra.mxu0 %v532
  %561 = vmatprep.subr.mxu0 0.0
  %562 = vmatpush1.xpose.msra.mxu0 %v529
  %563 = vmatprep.subr.mxu0 0.0
  %564 = vmatpush1.xpose.msra.mxu0 %v526
  %565 = vmatprep.subr.mxu0 0.0
  %566 = vmatpush1.xpose.msra.mxu0 %v523
  %567 = vmatprep.subr.mxu0 0.0
  %568 = vmatpush1.xpose.msra.mxu0 %v520
  %569 = vmatprep.subr.mxu0 0.0
  %570 = vmatpush1.xpose.msra.mxu0 %v517
  %571 = vmatprep.subr.mxu0 0.0
  %572 = vmatpush1.xpose.msra.mxu0 %v514
  %573 = vmatprep.subr.mxu0 0.0
  %574 = vmatpush1.xpose.msra.mxu0 %v511
  %575 = vmatprep.subr.mxu0 0.0
  %576 = vmatpush1.xpose.msra.mxu0 %v508
  %577 = vmatprep.subr.mxu0 0.0
  %578 = vmatpush1.xpose.msra.mxu0 %v505
  %579 = vmatprep.subr.mxu0 0.0
  %580 = vmatpush1.xpose.msra.mxu0 %v502
  %581 = vmatprep.subr.mxu0 0.0
  %582 = vmatpush2.xpose.msra.mxu0 0.0
  %583 = vmatprep.subr.mxu0 0.0
  %584 = vmatpush2.xpose.msra.mxu0 0.0
  %585 = vmatprep.subr.mxu0 0.0
  %586 = vmatpush2.xpose.msra.mxu0 0.0
  %587 = vmatprep.subr.mxu0 0.0
  %588 = vmatpush2.xpose.msra.mxu0 0.0
  %589 = vmatprep.subr.mxu0 0.0
  %590 = vmatpush2.xpose.msra.mxu0 0.0
  %591 = vmatprep.subr.mxu0 0.0
  %592 = vmatpush2.xpose.msra.mxu0 0.0
  %593 = vmatprep.subr.mxu0 0.0
  %594 = vmatpush2.xpose.msra.mxu0 0.0
  %595 = vmatprep.subr.mxu0 0.0
  %596 = vmatpush2.xpose.msra.mxu0 0.0
  %597 = vmatprep.subr.mxu0 0.0
  %598 = vmatpush2.xpose.msra.mxu0 0.0
  %599 = vmatprep.subr.mxu0 0.0
  %600 = vmatpush2.xpose.msra.mxu0 0.0
  %601 = vmatprep.subr.mxu0 0.0
  %602 = vmatpush2.xpose.msra.mxu0 0.0
  %603 = vmatprep.subr.mxu0 0.0
  %604 = vmatpush2.xpose.msra.mxu0 0.0
  %605 = vmatprep.subr.mxu0 0.0
  %606 = vmatpush2.xpose.msra.mxu0 0.0
  %607 = vmatprep.subr.mxu0 0.0
  %608 = vmatpush2.xpose.msra.mxu0 0.0
  %609 = vmatprep.subr.mxu0 0.0
  %610 = vmatpush2.xpose.msra.mxu0 0.0
  %611 = vmatprep.subr.mxu0 0.0
  %612 = vmatpush2.xpose.msra.mxu0 0.0
  %613 = vmatprep.mubr.f32.mxu0 0.0
  %614 = vmatmul.mubr.f32.gmra.mxu0 %v499
  %v615 = vpop.f32.mrf.mxu0
  %v616 = vadd.f32 %v497, %v615
  %v617 = vpop.f32.mrf.mxu0
  %618 = vdwg.mxu0
  %619 = vst [vmem:[%s7] sm:$0x1] %v616
  // Predicated region
  $region30: #{vnet_forward.1} parent=0 // pred_check
    _
  $region31: #{vnet_forward.1} parent=0 // pred_check_branch
    %621 = sbr.rel (0) target = $region33
  $region32: #{vnet_forward.1} parent=0 // pred_region
    _
  $region33: #{vnet_forward.1} parent=0 // pred_fallthru
    _
  // Predicated region
  $region34: #{vnet_forward.1} parent=0 // pred_check
    _
  $region35: #{vnet_forward.1} parent=0 // pred_check_branch
    %623 = sbr.rel (0) target = $region37
  $region36: #{vnet_forward.1} parent=0 // pred_region
    _
  $region37: #{vnet_forward.1} parent=0 // pred_fallthru
    _

</llo_original>
